<compile_context>
chip_gen: v7x
topology: tpu7x:2x2x1
jax: 0.10.0
libtpu: 0.0.40
codegen_flags: <defaults>
</compile_context>

<pallas_src>
import jax
import jax.numpy as jnp
from jax.experimental import pallas as pl
from jax.experimental.pallas import tpu as pltpu


def _round_up(x, m):
    return ((x + m - 1) // m) * m


def ffnn_kernel(x_ref, w1_ref, b1_ref, w2_ref, b2_ref, w3_ref, b3_ref,
                w4_ref, b4_ref, o_ref):
    # fc1 + ReLU  (bf16 MXU inputs, f32 accumulation, f32 elementwise)
    h = jnp.dot(x_ref[...], w1_ref[...],
                preferred_element_type=jnp.float32) + b1_ref[...]
    h = jnp.maximum(h, 0.0)
    # dropout(p=0.2) -> identity (inference semantics)
    # TODO(synk): training-mode dropout (pltpu.prng_random_bits mask) not emitted.
    # fc2 + ReLU
    h = jnp.dot(h.astype(jnp.bfloat16), w2_ref[...],
                preferred_element_type=jnp.float32) + b2_ref[...]
    h = jnp.maximum(h, 0.0)
    # fc3 + ReLU
    h = jnp.dot(h.astype(jnp.bfloat16), w3_ref[...],
                preferred_element_type=jnp.float32) + b3_ref[...]
    h = jnp.maximum(h, 0.0)
    # fc4 (logits; softmax member is never applied in forward)
    out = jnp.dot(h.astype(jnp.bfloat16), w4_ref[...],
                  preferred_element_type=jnp.float32) + b4_ref[...]
    o_ref[...] = out.astype(o_ref.dtype)


def ffnn_forward(x, params, *, tb=None):
    """x: (B, input_dim) f32; params: dict of w1,b1,...,w4,b4 (f32).

    Weights w_i are (in_features, out_features); biases b_i are (1, out_features).
    Returns (B, output_dim) f32 logits.
    """
    B, in_dim = x.shape
    out_dim = params["b4"].shape[-1]

    # --- batch tile: multiple of 8 sublanes, cap 256 (fills v6e/v7x MXU M) ---
    if tb is None:
        tb = 256 if B >= 256 else _round_up(B, 8)
    b_pad = _round_up(B, tb)

    # --- bf16 for all MXU operands; biases stay f32 (added post-accumulate) ---
    xb = x.astype(jnp.bfloat16)
    if b_pad != B:
        xb = jnp.pad(xb, ((0, b_pad - B), (0, 0)))

    w1 = params["w1"].astype(jnp.bfloat16)
    w2 = params["w2"].astype(jnp.bfloat16)
    w3 = params["w3"].astype(jnp.bfloat16)
    w4 = params["w4"].astype(jnp.bfloat16)
    b1, b2, b3, b4 = (params["b1"], params["b2"], params["b3"], params["b4"])

    # --- lane-dense output: pad fc4 to a multiple of 128 output columns ---
    out_pad = _round_up(out_dim, 128)
    if out_pad != out_dim:
        w4 = jnp.pad(w4, ((0, 0), (0, out_pad - out_dim)))
        b4 = jnp.pad(b4, ((0, 0), (0, out_pad - out_dim)))

    grid = (b_pad // tb,)

    def batch_spec(cols):
        return pl.BlockSpec((tb, cols), lambda i: (i, 0))

    def resident_spec(shape):
        return pl.BlockSpec(shape, lambda i: (0, 0))

    out = pl.pallas_call(
        ffnn_kernel,
        out_shape=jax.ShapeDtypeStruct((b_pad, out_pad), jnp.float32),
        grid=grid,
        in_specs=[
            batch_spec(in_dim),          # x: tiled over batch
            resident_spec(w1.shape), resident_spec(b1.shape),
            resident_spec(w2.shape), resident_spec(b2.shape),
            resident_spec(w3.shape), resident_spec(b3.shape),
            resident_spec(w4.shape), resident_spec(b4.shape),
        ],
        out_specs=batch_spec(out_pad),
        compiler_params=pltpu.CompilerParams(
            dimension_semantics=("parallel",)),
    )(xb, w1, b1, w2, b2, w3, b3, w4, b4)

    return out[:B, :out_dim]


def init_params(key, input_dim, hidden_dim, output_dim):
    """Deterministic init mirroring nn.Linear default (uniform +-1/sqrt(fan_in))."""
    dims = [(input_dim, hidden_dim), (hidden_dim, 128), (128, 64), (64, output_dim)]
    params = {}
    for idx, (fan_in, fan_out) in enumerate(dims, start=1):
        key, kw, kb = jax.random.split(key, 3)
        bound = 1.0 / jnp.sqrt(jnp.float32(fan_in))
        params[f"w{idx}"] = jax.random.uniform(
            kw, (fan_in, fan_out), jnp.float32, -bound, bound)
        params[f"b{idx}"] = jax.random.uniform(
            kb, (1, fan_out), jnp.float32, -bound, bound)
    return params


def reference_forward(x, p):
    """Pure-JAX reference mirroring the kernel's dtype path (bf16 MXU, f32 acc)."""
    def lin(h, w, b):
        return jnp.dot(h.astype(jnp.bfloat16), w.astype(jnp.bfloat16),
                       preferred_element_type=jnp.float32) + b
    h = jnp.maximum(lin(x, p["w1"], p["b1"]), 0.0)
    h = jnp.maximum(lin(h, p["w2"], p["b2"]), 0.0)
    h = jnp.maximum(lin(h, p["w3"], p["b3"]), 0.0)
    return lin(h, p["w4"], p["b4"])


if __name__ == "__main__":
    INPUT_DIM, HIDDEN_DIM, OUTPUT_DIM = 8, 32, 4
    BATCH = 8

    key = jax.random.PRNGKey(0)
    key, kx = jax.random.split(key)
    x = jax.random.normal(kx, (BATCH, INPUT_DIM), jnp.float32)
    params = init_params(key, INPUT_DIM, HIDDEN_DIM, OUTPUT_DIM)

    out = ffnn_forward(x, params)
    out = jax.block_until_ready(out)

    ref = reference_forward(x, params)
    assert out.shape == (BATCH, OUTPUT_DIM), out.shape
    assert jnp.allclose(out, ref, atol=2e-2, rtol=2e-2), (
        jnp.max(jnp.abs(out - ref)))
    print("KERNEL_OK")
</pallas_src>

<mosaic_0001>
module attributes {stable_mosaic.version = 11 : i64} {
  func.func @ffnn_kernel(%arg0: i32, %arg1: memref<8x8xbf16, #tpu.memory_space<vmem>>, %arg2: memref<8x32xbf16, #tpu.memory_space<vmem>>, %arg3: memref<1x32xf32, #tpu.memory_space<vmem>>, %arg4: memref<32x128xbf16, #tpu.memory_space<vmem>>, %arg5: memref<1x128xf32, #tpu.memory_space<vmem>>, %arg6: memref<128x64xbf16, #tpu.memory_space<vmem>>, %arg7: memref<1x64xf32, #tpu.memory_space<vmem>>, %arg8: memref<64x128xbf16, #tpu.memory_space<vmem>>, %arg9: memref<1x128xf32, #tpu.memory_space<vmem>>, %arg10: memref<8x128xf32, #tpu.memory_space<vmem>>) attributes {dimension_semantics = [#tpu.dimension_semantics<parallel>], iteration_bounds = array<i64: 1>, scalar_prefetch = 0 : i64, scratch_operands = 0 : i64, tpu.core_type = #tpu.core_type<tc>, window_params = [{transform_indices = @transform_0, window_bounds = array<i64: 8, 8>}, {pipeline_mode = #tpu.pipeline_mode<synchronous>, transform_indices = @transform_1, window_bounds = array<i64: 8, 32>}, {pipeline_mode = #tpu.pipeline_mode<synchronous>, transform_indices = @transform_2, window_bounds = array<i64: 1, 32>}, {pipeline_mode = #tpu.pipeline_mode<synchronous>, transform_indices = @transform_3, window_bounds = array<i64: 32, 128>}, {pipeline_mode = #tpu.pipeline_mode<synchronous>, transform_indices = @transform_4, window_bounds = array<i64: 1, 128>}, {pipeline_mode = #tpu.pipeline_mode<synchronous>, transform_indices = @transform_5, window_bounds = array<i64: 128, 64>}, {pipeline_mode = #tpu.pipeline_mode<synchronous>, transform_indices = @transform_6, window_bounds = array<i64: 1, 64>}, {pipeline_mode = #tpu.pipeline_mode<synchronous>, transform_indices = @transform_7, window_bounds = array<i64: 64, 128>}, {pipeline_mode = #tpu.pipeline_mode<synchronous>, transform_indices = @transform_8, window_bounds = array<i64: 1, 128>}, {transform_indices = @transform_9, window_bounds = array<i64: 8, 128>}]} {
    %c0 = arith.constant 0 : index
    %c0_0 = arith.constant 0 : index
    %0 = vector.load %arg1[%c0, %c0_0] : memref<8x8xbf16, #tpu.memory_space<vmem>>, vector<8x8xbf16>
    %c0_1 = arith.constant 0 : index
    %c0_2 = arith.constant 0 : index
    %1 = vector.load %arg2[%c0_1, %c0_2] : memref<8x32xbf16, #tpu.memory_space<vmem>>, vector<8x32xbf16>
    %cst = arith.constant dense<0.000000e+00> : vector<8x32xf32>
    %2 = tpu.matmul %0, %1, %cst {dimension_numbers = #tpu.dot_dimension_numbers<[1], [0], [0], [1], [0, 0, 1, 1], [], []>} : vector<8x8xbf16>, vector<8x32xbf16>, vector<8x32xf32> -> vector<8x32xf32>
    %c0_3 = arith.constant 0 : index
    %c0_4 = arith.constant 0 : index
    %3 = vector.load %arg3[%c0_3, %c0_4] : memref<1x32xf32, #tpu.memory_space<vmem>>, vector<1x32xf32>
    %4 = vector.broadcast %3 : vector<1x32xf32> to vector<8x32xf32>
    %5 = arith.addf %2, %4 : vector<8x32xf32>
    %cst_5 = arith.constant 0.000000e+00 : f32
    %6 = vector.broadcast %cst_5 : f32 to vector<8x32xf32>
    %7 = arith.maximumf %5, %6 : vector<8x32xf32>
    %8 = arith.truncf %7 : vector<8x32xf32> to vector<8x32xbf16>
    %c0_6 = arith.constant 0 : index
    %c0_7 = arith.constant 0 : index
    %9 = vector.load %arg4[%c0_6, %c0_7] : memref<32x128xbf16, #tpu.memory_space<vmem>>, vector<32x128xbf16>
    %cst_8 = arith.constant dense<0.000000e+00> : vector<8x128xf32>
    %10 = tpu.matmul %8, %9, %cst_8 {dimension_numbers = #tpu.dot_dimension_numbers<[1], [0], [0], [1], [0, 0, 1, 1], [], []>} : vector<8x32xbf16>, vector<32x128xbf16>, vector<8x128xf32> -> vector<8x128xf32>
    %c0_9 = arith.constant 0 : index
    %c0_10 = arith.constant 0 : index
    %11 = vector.load %arg5[%c0_9, %c0_10] : memref<1x128xf32, #tpu.memory_space<vmem>>, vector<1x128xf32>
    %12 = vector.broadcast %11 : vector<1x128xf32> to vector<8x128xf32>
    %13 = arith.addf %10, %12 : vector<8x128xf32>
    %cst_11 = arith.constant 0.000000e+00 : f32
    %14 = vector.broadcast %cst_11 : f32 to vector<8x128xf32>
    %15 = arith.maximumf %13, %14 : vector<8x128xf32>
    %16 = arith.truncf %15 : vector<8x128xf32> to vector<8x128xbf16>
    %c0_12 = arith.constant 0 : index
    %c0_13 = arith.constant 0 : index
    %17 = vector.load %arg6[%c0_12, %c0_13] : memref<128x64xbf16, #tpu.memory_space<vmem>>, vector<128x64xbf16>
    %cst_14 = arith.constant dense<0.000000e+00> : vector<8x64xf32>
    %18 = tpu.matmul %16, %17, %cst_14 {dimension_numbers = #tpu.dot_dimension_numbers<[1], [0], [0], [1], [0, 0, 1, 1], [], []>} : vector<8x128xbf16>, vector<128x64xbf16>, vector<8x64xf32> -> vector<8x64xf32>
    %c0_15 = arith.constant 0 : index
    %c0_16 = arith.constant 0 : index
    %19 = vector.load %arg7[%c0_15, %c0_16] : memref<1x64xf32, #tpu.memory_space<vmem>>, vector<1x64xf32>
    %20 = vector.broadcast %19 : vector<1x64xf32> to vector<8x64xf32>
    %21 = arith.addf %18, %20 : vector<8x64xf32>
    %cst_17 = arith.constant 0.000000e+00 : f32
    %22 = vector.broadcast %cst_17 : f32 to vector<8x64xf32>
    %23 = arith.maximumf %21, %22 : vector<8x64xf32>
    %24 = arith.truncf %23 : vector<8x64xf32> to vector<8x64xbf16>
    %c0_18 = arith.constant 0 : index
    %c0_19 = arith.constant 0 : index
    %25 = vector.load %arg8[%c0_18, %c0_19] : memref<64x128xbf16, #tpu.memory_space<vmem>>, vector<64x128xbf16>
    %cst_20 = arith.constant dense<0.000000e+00> : vector<8x128xf32>
    %26 = tpu.matmul %24, %25, %cst_20 {dimension_numbers = #tpu.dot_dimension_numbers<[1], [0], [0], [1], [0, 0, 1, 1], [], []>} : vector<8x64xbf16>, vector<64x128xbf16>, vector<8x128xf32> -> vector<8x128xf32>
    %c0_21 = arith.constant 0 : index
    %c0_22 = arith.constant 0 : index
    %27 = vector.load %arg9[%c0_21, %c0_22] : memref<1x128xf32, #tpu.memory_space<vmem>>, vector<1x128xf32>
    %28 = vector.broadcast %27 : vector<1x128xf32> to vector<8x128xf32>
    %29 = arith.addf %26, %28 : vector<8x128xf32>
    %c0_23 = arith.constant 0 : index
    %c0_24 = arith.constant 0 : index
    %30 = vector.load %arg10[%c0_23, %c0_24] : memref<8x128xf32, #tpu.memory_space<vmem>>, vector<8x128xf32>
    tpu.vector_store %arg10[%c0_23, %c0_24], %29 {strides = array<i32>} : memref<8x128xf32, #tpu.memory_space<vmem>>, vector<8x128xf32>,
    return
  }
  func.func @transform_0(%arg0: i32) -> (i32, i32) {
    %c0_i32 = arith.constant 0 : i32
    %c0_i32_0 = arith.constant 0 : i32
    return %arg0, %c0_i32 : i32, i32
  }
  func.func @transform_1(%arg0: i32) -> (i32, i32) {
    %c0_i32 = arith.constant 0 : i32
    %c0_i32_0 = arith.constant 0 : i32
    %c0_i32_1 = arith.constant 0 : i32
    return %c0_i32, %c0_i32_0 : i32, i32
  }
  func.func @transform_2(%arg0: i32) -> (i32, i32) {
    %c0_i32 = arith.constant 0 : i32
    %c0_i32_0 = arith.constant 0 : i32
    %c0_i32_1 = arith.constant 0 : i32
    return %c0_i32, %c0_i32_0 : i32, i32
  }
  func.func @transform_3(%arg0: i32) -> (i32, i32) {
    %c0_i32 = arith.constant 0 : i32
    %c0_i32_0 = arith.constant 0 : i32
    %c0_i32_1 = arith.constant 0 : i32
    return %c0_i32, %c0_i32_0 : i32, i32
  }
  func.func @transform_4(%arg0: i32) -> (i32, i32) {
    %c0_i32 = arith.constant 0 : i32
    %c0_i32_0 = arith.constant 0 : i32
    %c0_i32_1 = arith.constant 0 : i32
    return %c0_i32, %c0_i32_0 : i32, i32
  }
  func.func @transform_5(%arg0: i32) -> (i32, i32) {
    %c0_i32 = arith.constant 0 : i32
    %c0_i32_0 = arith.constant 0 : i32
    %c0_i32_1 = arith.constant 0 : i32
    return %c0_i32, %c0_i32_0 : i32, i32
  }
  func.func @transform_6(%arg0: i32) -> (i32, i32) {
    %c0_i32 = arith.constant 0 : i32
    %c0_i32_0 = arith.constant 0 : i32
    %c0_i32_1 = arith.constant 0 : i32
    return %c0_i32, %c0_i32_0 : i32, i32
  }
  func.func @transform_7(%arg0: i32) -> (i32, i32) {
    %c0_i32 = arith.constant 0 : i32
    %c0_i32_0 = arith.constant 0 : i32
    %c0_i32_1 = arith.constant 0 : i32
    return %c0_i32, %c0_i32_0 : i32, i32
  }
  func.func @transform_8(%arg0: i32) -> (i32, i32) {
    %c0_i32 = arith.constant 0 : i32
    %c0_i32_0 = arith.constant 0 : i32
    %c0_i32_1 = arith.constant 0 : i32
    return %c0_i32, %c0_i32_0 : i32, i32
  }
  func.func @transform_9(%arg0: i32) -> (i32, i32) {
    %c0_i32 = arith.constant 0 : i32
    %c0_i32_0 = arith.constant 0 : i32
    return %arg0, %c0_i32 : i32, i32
  }
}

</mosaic_0001>

<llo_original>
// kernel: tpu_custom_call.1
$region0: #{tpu_custom_call.1}
  #allocation0 [shape = 'u32[]', space=smem, size = 0x4, offset = 0x4, fixed_abs, tag = 'smem constant byte address 0x4 - core index']
  #allocation1 [shape = 'u32[144,128]{1,0:T(1,128)}', space=vmem, size = 0x12000, scoped, tag = 'internal scratch']
  %s0 = inlined_call_operand.vmem [shape: bf16[8,8], index: 0, kind: input, shape index: {}]
  %s1 = inlined_call_operand.vmem [shape: bf16[8,32], index: 1, kind: input, shape index: {}]
  %s2 = inlined_call_operand.vmem [shape: f32[1,32], index: 2, kind: input, shape index: {}]
  %s3 = inlined_call_operand.vmem [shape: bf16[32,128], index: 3, kind: input, shape index: {}]
  %s4 = inlined_call_operand.vmem [shape: f32[1,128], index: 4, kind: input, shape index: {}]
  %s5 = inlined_call_operand.vmem [shape: bf16[128,64], index: 5, kind: input, shape index: {}]
  %s6 = inlined_call_operand.vmem [shape: f32[1,64], index: 6, kind: input, shape index: {}]
  %s7 = inlined_call_operand.vmem [shape: bf16[64,128], index: 7, kind: input, shape index: {}]
  %s8 = inlined_call_operand.vmem [shape: f32[1,128], index: 8, kind: input, shape index: {}]
  %s9 = inlined_call_operand.hbm [shape: f32[8,128], index: 9, kind: output, shape index: {}]
  %s10 = sld [smem:[#allocation0]]
  $region46: #{tpu_custom_call.1} parent=0
    _
  %s12 = ssub.s32 1, %s10
  %s13 = scalar_select 0, %s12, %s10
  $region1: #{tpu_custom_call.1} parent=0
    #allocation2 [shape = 'u8[4096]{0}', space=vmem, size = 0x1000, scoped, tag = 'output window, operand 0, single buffered']
    #allocation3 [shape = 's32[1]{0}', space=sflag, size = 0x4, scoped, tag = 'scoped memory for tpu_custom_call.1']
    %14 = vsyncpa [#allocation3], 0
    // Predicated region
    $region2: #{tpu_custom_call.1} parent=1 // pred_check
      _
    $region3: #{tpu_custom_call.1} parent=1 // pred_check_branch
      %16 = sbr.rel (0) target = $region5
    $region4: #{tpu_custom_call.1} parent=1 // pred_region
      _
    $region5: #{tpu_custom_call.1} parent=1 // pred_fallthru
      _
    // Predicated region
    $region6: #{tpu_custom_call.1} parent=1 // pred_check
      _
    $region7: #{tpu_custom_call.1} parent=1 // pred_check_branch
      %18 = sbr.rel (0) target = $region9
    $region8: #{tpu_custom_call.1} parent=1 // pred_region
      _
    $region9: #{tpu_custom_call.1} parent=1 // pred_fallthru
      _
    // Predicated region
    $region10: #{tpu_custom_call.1} parent=1 // pred_check
      _
    $region11: #{tpu_custom_call.1} parent=1 // pred_check_branch
      %20 = sbr.rel (0) target = $region13
    $region12: #{tpu_custom_call.1} parent=1 // pred_region
      _
    $region13: #{tpu_custom_call.1} parent=1 // pred_fallthru
      _
    // Predicated region
    $region14: #{tpu_custom_call.1} parent=1 // pred_check
      _
    $region15: #{tpu_custom_call.1} parent=1 // pred_check_branch
      %22 = sbr.rel (0) target = $region17
    $region16: #{tpu_custom_call.1} parent=1 // pred_region
      _
    $region17: #{tpu_custom_call.1} parent=1 // pred_fallthru
      _
    // Predicated region
    $region18: #{tpu_custom_call.1} parent=1 // pred_check
      _
    $region19: #{tpu_custom_call.1} parent=1 // pred_check_branch
      %24 = sbr.rel (0) target = $region21
    $region20: #{tpu_custom_call.1} parent=1 // pred_region
      _
    $region21: #{tpu_custom_call.1} parent=1 // pred_fallthru
      _
    // Predicated region
    $region22: #{tpu_custom_call.1} parent=1 // pred_check
      _
    $region23: #{tpu_custom_call.1} parent=1 // pred_check_branch
      %26 = sbr.rel (0) target = $region25
    $region24: #{tpu_custom_call.1} parent=1 // pred_region
      _
    $region25: #{tpu_custom_call.1} parent=1 // pred_fallthru
      _
    // Predicated region
    $region26: #{tpu_custom_call.1} parent=1 // pred_check
      _
    $region27: #{tpu_custom_call.1} parent=1 // pred_check_branch
      %28 = sbr.rel (0) target = $region29
    $region28: #{tpu_custom_call.1} parent=1 // pred_region
      _
    $region29: #{tpu_custom_call.1} parent=1 // pred_fallthru
      _
    // Predicated region
    $region30: #{tpu_custom_call.1} parent=1 // pred_check
      _
    $region31: #{tpu_custom_call.1} parent=1 // pred_check_branch
      %30 = sbr.rel (0) target = $region33
    $region32: #{tpu_custom_call.1} parent=1 // pred_region
      _
    $region33: #{tpu_custom_call.1} parent=1 // pred_fallthru
      _
    // Predicated region
    $region34: #{tpu_custom_call.1} parent=1 // pred_check
      _
    $region35: #{tpu_custom_call.1} parent=1 // pred_check_branch
      %32 = sbr.rel (0) target = $region37
    $region36: #{tpu_custom_call.1} parent=1 // pred_region
      _
    $region37: #{tpu_custom_call.1} parent=1 // pred_fallthru
      _
    %v34 = vld [vmem:[%s0] sm:$0xf]
    %v35 = vld [vmem:[%s1] sm:$0xf]
    %v36 = vld [vmem:[%s2] sm:$0x1]
    %v38 = vlaneseq
    %v39 = vshrl.u32 %v38, 7
    %v40 = vsub.s32 0, %v39
    %v41 = vrot.slane %v36, %v40
    %vm43 = vcmask 64512
    %v45 = vsel %vm43, %v34, 0
    %vm47 = vcmask 1043456
    %v49 = vsel %vm47, %v35, 0
    %51 = vmatprep.subr.bf16.mxu0 0
    %52 = vmatpush1.bf16.msra.mxu0 %v49
    %53 = vmatprep.subr.bf16.mxu0 0
    %54 = vmatpush1.bf16.msra.mxu0 0
    %55 = vmatprep.subr.bf16.mxu0 0
    %56 = vmatpush1.bf16.msra.mxu0 0
    %57 = vmatprep.subr.bf16.mxu0 0
    %58 = vmatpush1.bf16.msra.mxu0 0
    %59 = vmatprep.subr.bf16.mxu0 0
    %60 = vmatpush1.bf16.msra.mxu0 0
    %61 = vmatprep.subr.bf16.mxu0 0
    %62 = vmatpush1.bf16.msra.mxu0 0
    %63 = vmatprep.subr.bf16.mxu0 0
    %64 = vmatpush1.bf16.msra.mxu0 0
    %65 = vmatprep.subr.bf16.mxu0 0
    %66 = vmatpush1.bf16.msra.mxu0 0
    %67 = vmatprep.subr.bf16.mxu0 0
    %68 = vmatpush1.bf16.msra.mxu0 0
    %69 = vmatprep.subr.bf16.mxu0 0
    %70 = vmatpush1.bf16.msra.mxu0 0
    %71 = vmatprep.subr.bf16.mxu0 0
    %72 = vmatpush1.bf16.msra.mxu0 0
    %73 = vmatprep.subr.bf16.mxu0 0
    %74 = vmatpush1.bf16.msra.mxu0 0
    %75 = vmatprep.subr.bf16.mxu0 0
    %76 = vmatpush1.bf16.msra.mxu0 0
    %77 = vmatprep.subr.bf16.mxu0 0
    %78 = vmatpush1.bf16.msra.mxu0 0
    %79 = vmatprep.subr.bf16.mxu0 0
    %80 = vmatpush1.bf16.msra.mxu0 0
    %81 = vmatprep.subr.bf16.mxu0 0
    %82 = vmatpush1.bf16.msra.mxu0 0
    %83 = vmatprep.mubr.bf16.mxu0 0
    %84 = vmatmul.mubr.bf16.gmra.mrb[0].mxu0 %v45
    %v85 = vpop.f32.mrb[0].mxu0
    %v86 = vadd.f32 %v41, %v85
    %v87 = vpop.f32.mrb[0].mxu0
    %v88 = vpop.f32.mrb[0].mxu0
    %v89 = vpop.f32.mrb[0].mxu0
    %90 = vdwg.mxu0
    %v91 = vmax.f32 %v86, 0.0
    %v92 = vpack.c.bf16 %v91, %v91
    %v93 = vld [vmem:[%s3] sm:$0xf]
    %v94 = vld [vmem:[%s3 + $0x4] sm:$0xf]
    %v95 = vld [vmem:[%s3 + $0x8] sm:$0xf]
    %v96 = vld [vmem:[%s3 + $0xc] sm:$0xf]
    %v97 = vld [vmem:[%s4] sm:$0x1]
    %v99 = vlaneseq
    %v100 = vshrl.u32 %v99, 7
    %v101 = vsub.s32 0, %v100
    %v102 = vrot.slane %v97, %v101
    %v108 = vunpack.c.l.b16 %v93
    %v109 = vunpack.c.l.b16 %v94
    %v110 = vunpack.c.l.b16 %v95
    %v111 = vunpack.c.l.b16 %v96
    %v112 = vpack.c.b16 %v109, %v108
    %v113 = vpack.c.b16 %v111, %v110
    %vm116 = vcmask 261120
    %v118 = vsel %vm116, %v92, 0
    %120 = vmatprep.subr.bf16.mxu0 0
    %121 = vmatpush1.bf16.msra.mxu0 %v112
    %122 = vmatprep.subr.bf16.mxu0 0
    %123 = vmatpush1.bf16.msra.mxu0 %v113
    %124 = vmatprep.subr.bf16.mxu0 0
    %125 = vmatpush1.bf16.msra.mxu0 0
    %126 = vmatprep.subr.bf16.mxu0 0
    %127 = vmatpush1.bf16.msra.mxu0 0
    %128 = vmatprep.subr.bf16.mxu0 0
    %129 = vmatpush1.bf16.msra.mxu0 0
    %130 = vmatprep.subr.bf16.mxu0 0
    %131 = vmatpush1.bf16.msra.mxu0 0
    %132 = vmatprep.subr.bf16.mxu0 0
    %133 = vmatpush1.bf16.msra.mxu0 0
    %134 = vmatprep.subr.bf16.mxu0 0
    %135 = vmatpush1.bf16.msra.mxu0 0
    %136 = vmatprep.subr.bf16.mxu0 0
    %137 = vmatpush1.bf16.msra.mxu0 0
    %138 = vmatprep.subr.bf16.mxu0 0
    %139 = vmatpush1.bf16.msra.mxu0 0
    %140 = vmatprep.subr.bf16.mxu0 0
    %141 = vmatpush1.bf16.msra.mxu0 0
    %142 = vmatprep.subr.bf16.mxu0 0
    %143 = vmatpush1.bf16.msra.mxu0 0
    %144 = vmatprep.subr.bf16.mxu0 0
    %145 = vmatpush1.bf16.msra.mxu0 0
    %146 = vmatprep.subr.bf16.mxu0 0
    %147 = vmatpush1.bf16.msra.mxu0 0
    %148 = vmatprep.subr.bf16.mxu0 0
    %149 = vmatpush1.bf16.msra.mxu0 0
    %150 = vmatprep.subr.bf16.mxu0 0
    %151 = vmatpush1.bf16.msra.mxu0 0
    %152 = vmatprep.mubr.bf16.mxu0 0
    %153 = vmatmul.mubr.bf16.gmra.mrb[0].mxu0 %v118
    %v154 = vpop.f32.mrb[0].mxu0
    %v155 = vadd.f32 %v102, %v154
    %v156 = vpop.f32.mrb[0].mxu0
    %v157 = vpop.f32.mrb[0].mxu0
    %v158 = vpop.f32.mrb[0].mxu0
    %159 = vdwg.mxu0
    %v160 = vmax.f32 %v155, 0.0
    %v161 = vpack.c.bf16 %v160, %v160
    %v162 = vld [vmem:[%s5] sm:$0xf]
    %v163 = vld [vmem:[%s5 + $0x4] sm:$0xf]
    %v164 = vld [vmem:[%s5 + $0x8] sm:$0xf]
    %v165 = vld [vmem:[%s5 + $0xc] sm:$0xf]
    %v166 = vld [vmem:[%s5 + $0x10] sm:$0xf]
    %v167 = vld [vmem:[%s5 + $0x14] sm:$0xf]
    %v168 = vld [vmem:[%s5 + $0x18] sm:$0xf]
    %v169 = vld [vmem:[%s5 + $0x1c] sm:$0xf]
    %v170 = vld [vmem:[%s5 + $0x20] sm:$0xf]
    %v171 = vld [vmem:[%s5 + $0x24] sm:$0xf]
    %v172 = vld [vmem:[%s5 + $0x28] sm:$0xf]
    %v173 = vld [vmem:[%s5 + $0x2c] sm:$0xf]
    %v174 = vld [vmem:[%s5 + $0x30] sm:$0xf]
    %v175 = vld [vmem:[%s5 + $0x34] sm:$0xf]
    %v176 = vld [vmem:[%s5 + $0x38] sm:$0xf]
    %v177 = vld [vmem:[%s5 + $0x3c] sm:$0xf]
    %v178 = vld [vmem:[%s6] sm:$0x1]
    %v180 = vlaneseq
    %v181 = vshrl.u32 %v180, 7
    %v182 = vsub.s32 0, %v181
    %v183 = vrot.slane %v178, %v182
    %v201 = vunpack.c.l.b16 %v162
    %v202 = vunpack.c.l.b16 %v163
    %v203 = vunpack.c.l.b16 %v164
    %v204 = vunpack.c.l.b16 %v165
    %v205 = vunpack.c.l.b16 %v166
    %v206 = vunpack.c.l.b16 %v167
    %v207 = vunpack.c.l.b16 %v168
    %v208 = vunpack.c.l.b16 %v169
    %v209 = vunpack.c.l.b16 %v170
    %v210 = vunpack.c.l.b16 %v171
    %v211 = vunpack.c.l.b16 %v172
    %v212 = vunpack.c.l.b16 %v173
    %v213 = vunpack.c.l.b16 %v174
    %v214 = vunpack.c.l.b16 %v175
    %v215 = vunpack.c.l.b16 %v176
    %v216 = vunpack.c.l.b16 %v177
    %v217 = vpack.c.b16 %v202, %v201
    %v218 = vpack.c.b16 %v204, %v203
    %v219 = vpack.c.b16 %v206, %v205
    %v220 = vpack.c.b16 %v208, %v207
    %v221 = vpack.c.b16 %v210, %v209
    %v222 = vpack.c.b16 %v212, %v211
    %v223 = vpack.c.b16 %v214, %v213
    %v224 = vpack.c.b16 %v216, %v215
    %233 = vmatprep.subr.bf16.mxu0 0
    %234 = vmatpush1.bf16.msra.mxu0 %v217
    %235 = vmatprep.subr.bf16.mxu0 0
    %236 = vmatpush1.bf16.msra.mxu0 %v218
    %237 = vmatprep.subr.bf16.mxu0 0
    %238 = vmatpush1.bf16.msra.mxu0 %v219
    %239 = vmatprep.subr.bf16.mxu0 0
    %240 = vmatpush1.bf16.msra.mxu0 %v220
    %241 = vmatprep.subr.bf16.mxu0 0
    %242 = vmatpush1.bf16.msra.mxu0 %v221
    %243 = vmatprep.subr.bf16.mxu0 0
    %244 = vmatpush1.bf16.msra.mxu0 %v222
    %245 = vmatprep.subr.bf16.mxu0 0
    %246 = vmatpush1.bf16.msra.mxu0 %v223
    %247 = vmatprep.subr.bf16.mxu0 0
    %248 = vmatpush1.bf16.msra.mxu0 %v224
    %249 = vmatprep.subr.bf16.mxu0 0
    %250 = vmatpush1.bf16.msra.mxu0 0
    %251 = vmatprep.subr.bf16.mxu0 0
    %252 = vmatpush1.bf16.msra.mxu0 0
    %253 = vmatprep.subr.bf16.mxu0 0
    %254 = vmatpush1.bf16.msra.mxu0 0
    %255 = vmatprep.subr.bf16.mxu0 0
    %256 = vmatpush1.bf16.msra.mxu0 0
    %257 = vmatprep.subr.bf16.mxu0 0
    %258 = vmatpush1.bf16.msra.mxu0 0
    %259 = vmatprep.subr.bf16.mxu0 0
    %260 = vmatpush1.bf16.msra.mxu0 0
    %261 = vmatprep.subr.bf16.mxu0 0
    %262 = vmatpush1.bf16.msra.mxu0 0
    %263 = vmatprep.subr.bf16.mxu0 0
    %264 = vmatpush1.bf16.msra.mxu0 0
    %265 = vmatprep.mubr.bf16.mxu0 0
    %266 = vmatmul.mubr.bf16.gmra.mrb[0].mxu0 %v161
    %v267 = vpop.f32.mrb[0].mxu0
    %v268 = vadd.f32 %v183, %v267
    %v269 = vpop.f32.mrb[0].mxu0
    %v270 = vpop.f32.mrb[0].mxu0
    %v271 = vpop.f32.mrb[0].mxu0
    %272 = vdwg.mxu0
    %v273 = vmax.f32 %v268, 0.0
    %v274 = vpack.c.bf16 %v273, %v273
    %v275 = vld [vmem:[%s7] sm:$0xf]
    %v276 = vld [vmem:[%s7 + $0x4] sm:$0xf]
    %v277 = vld [vmem:[%s7 + $0x8] sm:$0xf]
    %v278 = vld [vmem:[%s7 + $0xc] sm:$0xf]
    %v279 = vld [vmem:[%s7 + $0x10] sm:$0xf]
    %v280 = vld [vmem:[%s7 + $0x14] sm:$0xf]
    %v281 = vld [vmem:[%s7 + $0x18] sm:$0xf]
    %v282 = vld [vmem:[%s7 + $0x1c] sm:$0xf]
    %v283 = vld [vmem:[%s8] sm:$0x1]
    %v285 = vlaneseq
    %v286 = vshrl.u32 %v285, 7
    %v287 = vsub.s32 0, %v286
    %v288 = vrot.slane %v283, %v287
    %v298 = vunpack.c.l.b16 %v275
    %v299 = vunpack.c.l.b16 %v276
    %v300 = vunpack.c.l.b16 %v277
    %v301 = vunpack.c.l.b16 %v278
    %v302 = vunpack.c.l.b16 %v279
    %v303 = vunpack.c.l.b16 %v280
    %v304 = vunpack.c.l.b16 %v281
    %v305 = vunpack.c.l.b16 %v282
    %v306 = vpack.c.b16 %v299, %v298
    %v307 = vpack.c.b16 %v301, %v300
    %v308 = vpack.c.b16 %v303, %v302
    %v309 = vpack.c.b16 %v305, %v304
    %vm314 = vcmask 523264
    %v316 = vsel %vm314, %v274, 0
    %318 = vmatprep.subr.bf16.mxu0 0
    %319 = vmatpush1.bf16.msra.mxu0 %v306
    %320 = vmatprep.subr.bf16.mxu0 0
    %321 = vmatpush1.bf16.msra.mxu0 %v307
    %322 = vmatprep.subr.bf16.mxu0 0
    %323 = vmatpush1.bf16.msra.mxu0 %v308
    %324 = vmatprep.subr.bf16.mxu0 0
    %325 = vmatpush1.bf16.msra.mxu0 %v309
    %326 = vmatprep.subr.bf16.mxu0 0
    %327 = vmatpush1.bf16.msra.mxu0 0
    %328 = vmatprep.subr.bf16.mxu0 0
    %329 = vmatpush1.bf16.msra.mxu0 0
    %330 = vmatprep.subr.bf16.mxu0 0
    %331 = vmatpush1.bf16.msra.mxu0 0
    %332 = vmatprep.subr.bf16.mxu0 0
    %333 = vmatpush1.bf16.msra.mxu0 0
    %334 = vmatprep.subr.bf16.mxu0 0
    %335 = vmatpush1.bf16.msra.mxu0 0
    %336 = vmatprep.subr.bf16.mxu0 0
    %337 = vmatpush1.bf16.msra.mxu0 0
    %338 = vmatprep.subr.bf16.mxu0 0
    %339 = vmatpush1.bf16.msra.mxu0 0
    %340 = vmatprep.subr.bf16.mxu0 0
    %341 = vmatpush1.bf16.msra.mxu0 0
    %342 = vmatprep.subr.bf16.mxu0 0
    %343 = vmatpush1.bf16.msra.mxu0 0
    %344 = vmatprep.subr.bf16.mxu0 0
    %345 = vmatpush1.bf16.msra.mxu0 0
    %346 = vmatprep.subr.bf16.mxu0 0
    %347 = vmatpush1.bf16.msra.mxu0 0
    %348 = vmatprep.subr.bf16.mxu0 0
    %349 = vmatpush1.bf16.msra.mxu0 0
    %350 = vmatprep.mubr.bf16.mxu0 0
    %351 = vmatmul.mubr.bf16.gmra.mrb[0].mxu0 %v316
    %v352 = vpop.f32.mrb[0].mxu0
    %v353 = vadd.f32 %v288, %v352
    %v354 = vpop.f32.mrb[0].mxu0
    %v355 = vpop.f32.mrb[0].mxu0
    %v356 = vpop.f32.mrb[0].mxu0
    %357 = vdwg.mxu0
    %358 = vst [vmem:[#allocation2] sm:$0xff] %v353
    // Predicated region
    $region38: #{tpu_custom_call.1} parent=1 // pred_check
      _
    $region39: #{tpu_custom_call.1} parent=1 // pred_check_branch
      %360 = sbr.rel (0) target = $region41
    $region40: #{tpu_custom_call.1} parent=1 // pred_region
      %s362 = ssub.s32 128, 128
      %363 = vsyncadd [#allocation3], %s362
      %s365 = sshll.u32 [#allocation2], 4
      %s366 = int_to_ptr.vmem [resolvable:$true] %s365
      %368 = dma.vmem_to_hbm [thread:$0]  %s366, 128, %s9, [#allocation3]
    $region41: #{tpu_custom_call.1} parent=1 // pred_fallthru
      _
    // Predicated region
    $region42: #{tpu_custom_call.1} parent=1 // pred_check
      _
    $region43: #{tpu_custom_call.1} parent=1 // pred_check_branch
      %370 = sbr.rel (0) target = $region45
    $region44: #{tpu_custom_call.1} parent=1 // pred_region
      %371 = dma.done [#allocation3], 128
    $region45: #{tpu_custom_call.1} parent=1 // pred_fallthru
      _
    %372 = vsyncpa [#allocation3], 1

</llo_original>
